<compile_context>
chip_gen: v6e
topology: v6e:2x2x1
jax: 0.10.0
libtpu: 0.0.40
codegen_flags: <defaults>
</compile_context>

<pallas_src>
import functools

import jax
import jax.numpy as jnp
from jax.experimental import pallas as pl
from jax.experimental.pallas import tpu as pltpu

EPS = 1e-5
_INV_SQRT2 = 0.7071067811865476  # 1/sqrt(2) for the exact (erf) GELU


def _mlp_ff_kernel(x_ref, g_ref, beta_ref, w1_ref, b1_ref, w2_ref, b2_ref,
                   o_ref, y_ref, acc_ref, *, d_true, approximate_gelu):
    # Grid: (row tiles [parallel], H blocks [arbitrary]).
    j = pl.program_id(1)

    @pl.when(j == 0)
    def _():
        # LayerNorm once per row tile, f32 stats over the TRUE feature width (padded lanes masked).
        xf = x_ref[...].astype(jnp.float32)
        d_pad = xf.shape[-1]
        inv_d = jnp.float32(1.0 / d_true)
        mu = jnp.sum(xf, axis=-1, keepdims=True) * inv_d          # padded lanes are zero
        diff = xf - mu
        if d_true != d_pad:                                       # static: only when D was padded
            col = jax.lax.broadcasted_iota(jnp.int32, xf.shape, 1)
            diff = jnp.where(col < d_true, diff, 0.0)
        var = jnp.sum(diff * diff, axis=-1, keepdims=True) * inv_d
        y = diff * jax.lax.rsqrt(var + EPS) * g_ref[...] + beta_ref[...]
        y_ref[...] = y.astype(y_ref.dtype)                        # LN output, matmul dtype
        acc_ref[...] = jnp.zeros_like(acc_ref)                    # f32 accumulator init

    # --- Linear(D -> tk H-block) on the MXU (f32 accumulation), bias, GELU ---
    h = jnp.dot(y_ref[...], w1_ref[...],
                preferred_element_type=jnp.float32) + b1_ref[...]
    if approximate_gelu:
        h = jax.nn.gelu(h, approximate=True)        # tanh -> EUP slot (off the VALU)
    else:
        h = 0.5 * h * (1.0 + jax.lax.erf(h * _INV_SQRT2))   # exact erf (nn.GELU() default)

    # Dropout(p=0.0) is the identity -> omitted.

    # --- Linear(tk H-block -> D), accumulate in f32 ---
    acc_ref[...] += jnp.dot(h.astype(w2_ref.dtype), w2_ref[...],
                            preferred_element_type=jnp.float32)

    @pl.when(j == pl.num_programs(1) - 1)
    def _():
        # Output bias + residual (re-read x_ref here instead of keeping it live across the MXU phase).
        out = acc_ref[...] + b2_ref[...] + x_ref[...].astype(jnp.float32)
        o_ref[...] = out.astype(o_ref.dtype)


def mlp_feedforward(x, gamma, beta, w1, b1, w2, b2, *, row_tile=None,
                    matmul_dtype=None, approximate_gelu=False):
    """x: [..., D]. Params: gamma/beta [D], w1 [D,H], b1 [H], w2 [H,D], b2 [D]."""
    orig_shape = x.shape
    D = orig_shape[-1]
    H = w1.shape[1]
    xf = x.reshape(-1, D)
    N = xf.shape[0]

    # Lane-dense padding of the feature axes to 128 multiples (no-op when already aligned).
    # TODO(synk): v6e/v7x prefer 256-multiple contraction widths; we keep 128-multiples for the
    # D/H padding (less wasted HBM traffic) and instead make the H tile a 256/512 multiple below.
    D_pad = 128 * pl.cdiv(D, 128)
    H_pad = 128 * pl.cdiv(H, 128)

    if matmul_dtype is None:
        # bf16 models use bf16 MXU operands. For f32 models pass matmul_dtype=jnp.bfloat16 if
        # ~1e-3 relative error is acceptable (3-4x MXU throughput, half the weight DMA).
        matmul_dtype = jnp.bfloat16 if x.dtype == jnp.bfloat16 else x.dtype
    matmul_dtype = jnp.dtype(matmul_dtype)
    # TODO(synk): v7x inference could store w1/w2 as fp8 with per-channel scales (halves weight
    # VMEM/DMA); needs a quantization scheme, not drop-in.

    # --- Row tile: sublane-packing multiple (8 f32 / 16 bf16 / 32 int8), autoscaled up when the
    # feature dims are small so each grid step moves >= ~1 MiB.
    x_bytes = jnp.dtype(x.dtype).itemsize
    pack = 8 * max(1, 4 // x_bytes)
    if row_tile is None:
        row_tile = 1024 if max(D_pad, H_pad) <= 512 else 256
    n_pack = pack * pl.cdiv(N, pack)                 # N rounded up to the sublane packing
    tn = max(pack, (min(row_tile, n_pack) // pack) * pack)
    # Megacore (v7x has 2 TCs): keep >= 2 blocks on the "parallel" row axis whenever N allows it.
    if N >= 2 * pack and pl.cdiv(N, tn) < 2:
        tn = max(pack, pl.cdiv(pl.cdiv(N, 2), pack) * pack)

    # --- H tile: 512/256/128; must divide H_pad exactly (a partial H block would contaminate
    # the accumulator through the contraction).
    tk = 512 if H_pad % 512 == 0 else (256 if H_pad % 256 == 0 else 128)
    tk = min(tk, H_pad)

    # --- Generation-aware VMEM budget: ~85% of physical per-core VMEM
    # (128 MiB on v5e/v6e, 64 MiB on v7x), leaving headroom for compiler-internal scratch.
    try:
        vmem_cap = int(pltpu.get_tpu_info().vmem_capacity_bytes)
    except Exception:
        vmem_cap = 64 * 1024 * 1024                  # conservative fallback (v7x per-core)
    vmem_limit = int(0.85 * vmem_cap)

    w_bytes = matmul_dtype.itemsize
    y_bytes = matmul_dtype.itemsize

    def est(tn_, tk_):
        return (4 * tn_ * D_pad * x_bytes                     # x + out row tiles (double-buffered)
                + 2 * (D_pad * tk_ + tk_ * D_pad) * w_bytes   # w1/w2 H-blocks (double-buffered)
                + 2 * tk_ * 4 + 6 * D_pad * 4                 # biases / gamma / beta
                + tn_ * D_pad * (y_bytes + 4)                 # LN-output + f32 accumulator scratch
                + 2 * tn_ * tk_ * 4)                          # f32 hidden intermediate headroom

    budget = int(0.8 * vmem_limit)
    while est(tn, tk) > budget and tn > pack:                 # shrink rows first
        tn = max(pack, ((tn // 2) // pack) * pack)
    while est(tn, tk) > budget and tk > 128:                  # then the H tile (still divides H_pad)
        tk //= 2

    # --- Pad COLUMNS only. Rows are handled by the cdiv grid's partial last block (no row pad,
    # no output row slice -> no extra HBM round trips of the activations).
    xp = jnp.pad(xf, ((0, 0), (0, D_pad - D))) if D_pad != D else xf
    gamma2 = jnp.pad(gamma.astype(jnp.float32), (0, D_pad - D)).reshape(1, D_pad)
    beta2 = jnp.pad(beta.astype(jnp.float32), (0, D_pad - D)).reshape(1, D_pad)
    b1_2 = jnp.pad(b1.astype(jnp.float32), (0, H_pad - H)).reshape(1, H_pad)
    b2_2 = jnp.pad(b2.astype(jnp.float32), (0, D_pad - D)).reshape(1, D_pad)
    w1_p = jnp.pad(w1, ((0, D_pad - D), (0, H_pad - H))).astype(matmul_dtype)
    w2_p = jnp.pad(w2, ((0, H_pad - H), (0, D_pad - D))).astype(matmul_dtype)

    grid = (pl.cdiv(N, tn), H_pad // tk)   # rows (parallel), H blocks (arbitrary reduction)

    kernel = functools.partial(_mlp_ff_kernel, d_true=D,
                               approximate_gelu=approximate_gelu)

    out = pl.pallas_call(
        kernel,
        out_shape=jax.ShapeDtypeStruct((N, D_pad), x.dtype),
        grid_spec=pltpu.PrefetchScalarGridSpec(
            num_scalar_prefetch=0,
            grid=grid,
            in_specs=[
                pl.BlockSpec((tn, D_pad), lambda i, j: (i, 0)),    # x rows (partial last block OK)
                pl.BlockSpec((1, D_pad), lambda i, j: (0, 0)),     # gamma (invariant, tiny)
                pl.BlockSpec((1, D_pad), lambda i, j: (0, 0)),     # beta
                pl.BlockSpec((D_pad, tk), lambda i, j: (0, j)),    # w1 H-block (streamed)
                pl.BlockSpec((1, tk), lambda i, j: (0, j)),        # b1 H-block
                pl.BlockSpec((tk, D_pad), lambda i, j: (j, 0)),    # w2 H-block (streamed)
                pl.BlockSpec((1, D_pad), lambda i, j: (0, 0)),     # b2
            ],
            out_specs=pl.BlockSpec((tn, D_pad), lambda i, j: (i, 0)),
            scratch_shapes=[
                pltpu.VMEM((tn, D_pad), matmul_dtype),   # LayerNorm output y (feeds both matmuls)
                pltpu.VMEM((tn, D_pad), jnp.float32),    # f32 accumulator over H blocks
            ],
        ),
        compiler_params=pltpu.CompilerParams(
            dimension_semantics=("parallel", "arbitrary"),
            vmem_limit_bytes=vmem_limit),
    )(xp, gamma2, beta2, w1_p, b1_2, w2_p, b2_2)

    out = out[:, :D] if D_pad != D else out
    return out.reshape(orig_shape)


def reference(x, gamma, beta, w1, b1, w2, b2):
    xf = x.astype(jnp.float32)
    mu = jnp.mean(xf, axis=-1, keepdims=True)
    var = jnp.mean((xf - mu) ** 2, axis=-1, keepdims=True)
    y = (xf - mu) / jnp.sqrt(var + EPS) * gamma + beta
    h = y @ w1 + b1
    h = jax.nn.gelu(h, approximate=False)
    out = h @ w2 + b2
    return (out + xf).astype(x.dtype)


if __name__ == "__main__":
    B, S, D, H = 2, 8, 32, 64   # input_dim=32, hidden_size1=64, dropout=0.0
    key = jax.random.PRNGKey(0)
    kx, kw1, kb1, kw2, kb2, kx2 = jax.random.split(key, 6)

    x = jax.random.normal(kx, (B, S, D), dtype=jnp.float32)

    # Deterministic parameter init (shapes match nn.LayerNorm(D), nn.Linear(D,H), nn.Linear(H,D)).
    gamma = jnp.ones((D,), jnp.float32)
    beta = jnp.zeros((D,), jnp.float32)
    lim1 = 1.0 / jnp.sqrt(jnp.float32(D))
    w1 = jax.random.uniform(kw1, (D, H), jnp.float32, -lim1, lim1)   # (in, out) layout
    b1 = jax.random.uniform(kb1, (H,), jnp.float32, -lim1, lim1)
    lim2 = 1.0 / jnp.sqrt(jnp.float32(H))
    w2 = jax.random.uniform(kw2, (H, D), jnp.float32, -lim2, lim2)
    b2 = jax.random.uniform(kb2, (D,), jnp.float32, -lim2, lim2)

    out = mlp_feedforward(x, gamma, beta, w1, b1, w2, b2)
    out = jax.block_until_ready(out)
    ref = reference(x, gamma, beta, w1, b1, w2, b2)
    assert out.shape == x.shape and out.dtype == x.dtype
    assert jnp.allclose(out, ref, atol=1e-4, rtol=1e-4), "mismatch vs reference"

    # Ragged row count (N=13): exercises the cdiv grid with a single partial row block.
    x2 = jax.random.normal(kx2, (1, 13, D), dtype=jnp.float32)
    out2 = jax.block_until_ready(mlp_feedforward(x2, gamma, beta, w1, b1, w2, b2))
    ref2 = reference(x2, gamma, beta, w1, b1, w2, b2)
    assert out2.shape == x2.shape
    assert jnp.allclose(out2, ref2, atol=1e-4, rtol=1e-4), "mismatch vs reference (ragged)"

    print("KERNEL_OK")
</pallas_src>

<mosaic_0001>
module attributes {stable_mosaic.version = 11 : i64} {
  func.func @_mlp_ff_kernel(%arg0: i32, %arg1: i32, %arg2: memref<8x128xf32, #tpu.memory_space<vmem>>, %arg3: memref<1x128xf32, #tpu.memory_space<vmem>>, %arg4: memref<1x128xf32, #tpu.memory_space<vmem>>, %arg5: memref<128x128xf32, #tpu.memory_space<vmem>>, %arg6: memref<1x128xf32, #tpu.memory_space<vmem>>, %arg7: memref<128x128xf32, #tpu.memory_space<vmem>>, %arg8: memref<1x128xf32, #tpu.memory_space<vmem>>, %arg9: memref<8x128xf32, #tpu.memory_space<vmem>>, %arg10: memref<8x128xf32, #tpu.memory_space<vmem>>, %arg11: memref<8x128xf32, #tpu.memory_space<vmem>>) attributes {dimension_semantics = [#tpu.dimension_semantics<parallel>, #tpu.dimension_semantics<arbitrary>], iteration_bounds = array<i64: 2, 1>, scalar_prefetch = 0 : i64, scratch_operands = 2 : i64, tpu.core_type = #tpu.core_type<tc>, window_params = [{transform_indices = @transform_0, window_bounds = array<i64: 8, 128>}, {pipeline_mode = #tpu.pipeline_mode<synchronous>, transform_indices = @transform_1, window_bounds = array<i64: 1, 128>}, {pipeline_mode = #tpu.pipeline_mode<synchronous>, transform_indices = @transform_2, window_bounds = array<i64: 1, 128>}, {transform_indices = @transform_3, window_bounds = array<i64: 128, 128>}, {transform_indices = @transform_4, window_bounds = array<i64: 1, 128>}, {transform_indices = @transform_5, window_bounds = array<i64: 128, 128>}, {pipeline_mode = #tpu.pipeline_mode<synchronous>, transform_indices = @transform_6, window_bounds = array<i64: 1, 128>}, {transform_indices = @transform_7, window_bounds = array<i64: 8, 128>}]} {
    %c0_i32 = arith.constant 0 : i32
    %0 = arith.cmpi eq, %arg1, %c0_i32 : i32
    %1 = arith.extui %0 : i1 to i32
    %c0_i32_0 = arith.constant 0 : i32
    %2 = arith.cmpi ne, %1, %c0_i32_0 : i32
    scf.if %2 {
      %c0_18 = arith.constant 0 : index
      %c0_19 = arith.constant 0 : index
      %25 = vector.load %arg2[%c0_18, %c0_19] : memref<8x128xf32, #tpu.memory_space<vmem>>, vector<8x128xf32>
      %cst_20 = arith.constant dense<0.000000e+00> : vector<8xf32>
      %26 = vector.multi_reduction <add>, %25, %cst_20 [1] : vector<8x128xf32> to vector<8xf32>
      %27 = vector.shape_cast %26 : vector<8xf32> to vector<8x1xf32>
      %cst_21 = arith.constant 3.125000e-02 : f32
      %28 = vector.broadcast %cst_21 : f32 to vector<8x1xf32>
      %29 = arith.mulf %27, %28 : vector<8x1xf32>
      %30 = vector.broadcast %29 : vector<8x1xf32> to vector<8x128xf32>
      %31 = arith.subf %25, %30 : vector<8x128xf32>
      %32 = tpu.iota {dimensions = array<i32: 1>} : vector<8x128xi32>
      %c32_i32 = arith.constant 32 : i32
      %33 = vector.broadcast %c32_i32 : i32 to vector<8x128xi32>
      %34 = arith.cmpi slt, %32, %33 : vector<8x128xi32>
      %cst_22 = arith.constant 0.000000e+00 : f32
      %35 = vector.broadcast %cst_22 : f32 to vector<8x128xf32>
      %36 = arith.select %34, %31, %35 : vector<8x128xi1>, vector<8x128xf32>
      %37 = arith.mulf %36, %36 : vector<8x128xf32>
      %cst_23 = arith.constant dense<0.000000e+00> : vector<8xf32>
      %38 = vector.multi_reduction <add>, %37, %cst_23 [1] : vector<8x128xf32> to vector<8xf32>
      %39 = vector.shape_cast %38 : vector<8xf32> to vector<8x1xf32>
      %cst_24 = arith.constant 3.125000e-02 : f32
      %40 = vector.broadcast %cst_24 : f32 to vector<8x1xf32>
      %41 = arith.mulf %39, %40 : vector<8x1xf32>
      %cst_25 = arith.constant 9.99999974E-6 : f32
      %42 = vector.broadcast %cst_25 : f32 to vector<8x1xf32>
      %43 = arith.addf %41, %42 : vector<8x1xf32>
      %44 = math.rsqrt %43 : vector<8x1xf32>
      %45 = vector.broadcast %44 : vector<8x1xf32> to vector<8x128xf32>
      %46 = arith.mulf %36, %45 : vector<8x128xf32>
      %c0_26 = arith.constant 0 : index
      %c0_27 = arith.constant 0 : index
      %47 = vector.load %arg3[%c0_26, %c0_27] : memref<1x128xf32, #tpu.memory_space<vmem>>, vector<1x128xf32>
      %48 = vector.broadcast %47 : vector<1x128xf32> to vector<8x128xf32>
      %49 = arith.mulf %46, %48 : vector<8x128xf32>
      %c0_28 = arith.constant 0 : index
      %c0_29 = arith.constant 0 : index
      %50 = vector.load %arg4[%c0_28, %c0_29] : memref<1x128xf32, #tpu.memory_space<vmem>>, vector<1x128xf32>
      %51 = vector.broadcast %50 : vector<1x128xf32> to vector<8x128xf32>
      %52 = arith.addf %49, %51 : vector<8x128xf32>
      %c0_30 = arith.constant 0 : index
      %c0_31 = arith.constant 0 : index
      %53 = vector.load %arg10[%c0_30, %c0_31] : memref<8x128xf32, #tpu.memory_space<vmem>>, vector<8x128xf32>
      tpu.vector_store %arg10[%c0_30, %c0_31], %52 {strides = array<i32>} : memref<8x128xf32, #tpu.memory_space<vmem>>, vector<8x128xf32>,
      %cst_32 = arith.constant 0.000000e+00 : f32
      %54 = vector.broadcast %cst_32 : f32 to vector<8x128xf32>
      %c0_33 = arith.constant 0 : index
      %c0_34 = arith.constant 0 : index
      %55 = vector.load %arg11[%c0_33, %c0_34] : memref<8x128xf32, #tpu.memory_space<vmem>>, vector<8x128xf32>
      tpu.vector_store %arg11[%c0_33, %c0_34], %54 {strides = array<i32>} : memref<8x128xf32, #tpu.memory_space<vmem>>, vector<8x128xf32>,
    } else {
    }
    %c0 = arith.constant 0 : index
    %c0_1 = arith.constant 0 : index
    %3 = vector.load %arg10[%c0, %c0_1] : memref<8x128xf32, #tpu.memory_space<vmem>>, vector<8x128xf32>
    %c0_2 = arith.constant 0 : index
    %c0_3 = arith.constant 0 : index
    %4 = vector.load %arg5[%c0_2, %c0_3] : memref<128x128xf32, #tpu.memory_space<vmem>>, vector<128x128xf32>
    %cst = arith.constant dense<0.000000e+00> : vector<8x128xf32>
    %5 = tpu.matmul %3, %4, %cst {dimension_numbers = #tpu.dot_dimension_numbers<[1], [0], [0], [1], [0, 0, 1, 1], [], []>} : vector<8x128xf32>, vector<128x128xf32>, vector<8x128xf32> -> vector<8x128xf32>
    %c0_4 = arith.constant 0 : index
    %c0_5 = arith.constant 0 : index
    %6 = vector.load %arg6[%c0_4, %c0_5] : memref<1x128xf32, #tpu.memory_space<vmem>>, vector<1x128xf32>
    %7 = vector.broadcast %6 : vector<1x128xf32> to vector<8x128xf32>
    %8 = arith.addf %5, %7 : vector<8x128xf32>
    %cst_6 = arith.constant 5.000000e-01 : f32
    %9 = vector.broadcast %cst_6 : f32 to vector<8x128xf32>
    %10 = arith.mulf %9, %8 : vector<8x128xf32>
    %cst_7 = arith.constant 0.707106769 : f32
    %11 = vector.broadcast %cst_7 : f32 to vector<8x128xf32>
    %12 = arith.mulf %8, %11 : vector<8x128xf32>
    %13 = math.erf %12 : vector<8x128xf32>
    %cst_8 = arith.constant 1.000000e+00 : f32
    %14 = vector.broadcast %cst_8 : f32 to vector<8x128xf32>
    %15 = arith.addf %14, %13 : vector<8x128xf32>
    %16 = arith.mulf %10, %15 : vector<8x128xf32>
    %c0_9 = arith.constant 0 : index
    %c0_10 = arith.constant 0 : index
    %17 = vector.load %arg11[%c0_9, %c0_10] : memref<8x128xf32, #tpu.memory_space<vmem>>, vector<8x128xf32>
    %c0_11 = arith.constant 0 : index
    %c0_12 = arith.constant 0 : index
    %18 = vector.load %arg7[%c0_11, %c0_12] : memref<128x128xf32, #tpu.memory_space<vmem>>, vector<128x128xf32>
    %cst_13 = arith.constant dense<0.000000e+00> : vector<8x128xf32>
    %19 = tpu.matmul %16, %18, %cst_13 {dimension_numbers = #tpu.dot_dimension_numbers<[1], [0], [0], [1], [0, 0, 1, 1], [], []>} : vector<8x128xf32>, vector<128x128xf32>, vector<8x128xf32> -> vector<8x128xf32>
    %20 = arith.addf %17, %19 : vector<8x128xf32>
    %c0_14 = arith.constant 0 : index
    %c0_15 = arith.constant 0 : index
    %21 = vector.load %arg11[%c0_14, %c0_15] : memref<8x128xf32, #tpu.memory_space<vmem>>, vector<8x128xf32>
    tpu.vector_store %arg11[%c0_14, %c0_15], %20 {strides = array<i32>} : memref<8x128xf32, #tpu.memory_space<vmem>>, vector<8x128xf32>,
    %c0_i32_16 = arith.constant 0 : i32
    %22 = arith.cmpi eq, %arg1, %c0_i32_16 : i32
    %23 = arith.extui %22 : i1 to i32
    %c0_i32_17 = arith.constant 0 : i32
    %24 = arith.cmpi ne, %23, %c0_i32_17 : i32
    scf.if %24 {
      %c0_18 = arith.constant 0 : index
      %c0_19 = arith.constant 0 : index
      %25 = vector.load %arg11[%c0_18, %c0_19] : memref<8x128xf32, #tpu.memory_space<vmem>>, vector<8x128xf32>
      %c0_20 = arith.constant 0 : index
      %c0_21 = arith.constant 0 : index
      %26 = vector.load %arg8[%c0_20, %c0_21] : memref<1x128xf32, #tpu.memory_space<vmem>>, vector<1x128xf32>
      %27 = vector.broadcast %26 : vector<1x128xf32> to vector<8x128xf32>
      %28 = arith.addf %25, %27 : vector<8x128xf32>
      %c0_22 = arith.constant 0 : index
      %c0_23 = arith.constant 0 : index
      %29 = vector.load %arg2[%c0_22, %c0_23] : memref<8x128xf32, #tpu.memory_space<vmem>>, vector<8x128xf32>
      %30 = arith.addf %28, %29 : vector<8x128xf32>
      %c0_24 = arith.constant 0 : index
      %c0_25 = arith.constant 0 : index
      %31 = vector.load %arg9[%c0_24, %c0_25] : memref<8x128xf32, #tpu.memory_space<vmem>>, vector<8x128xf32>
      tpu.vector_store %arg9[%c0_24, %c0_25], %30 {strides = array<i32>} : memref<8x128xf32, #tpu.memory_space<vmem>>, vector<8x128xf32>,
    } else {
    }
    return
  }
  func.func @transform_0(%arg0: i32, %arg1: i32) -> (i32, i32) {
    %c0_i32 = arith.constant 0 : i32
    %c0_i32_0 = arith.constant 0 : i32
    return %arg0, %c0_i32 : i32, i32
  }
  func.func @transform_1(%arg0: i32, %arg1: i32) -> (i32, i32) {
    %c0_i32 = arith.constant 0 : i32
    %c0_i32_0 = arith.constant 0 : i32
    %c0_i32_1 = arith.constant 0 : i32
    return %c0_i32, %c0_i32_0 : i32, i32
  }
  func.func @transform_2(%arg0: i32, %arg1: i32) -> (i32, i32) {
    %c0_i32 = arith.constant 0 : i32
    %c0_i32_0 = arith.constant 0 : i32
    %c0_i32_1 = arith.constant 0 : i32
    return %c0_i32, %c0_i32_0 : i32, i32
  }
  func.func @transform_3(%arg0: i32, %arg1: i32) -> (i32, i32) {
    %c0_i32 = arith.constant 0 : i32
    %c0_i32_0 = arith.constant 0 : i32
    return %c0_i32, %arg1 : i32, i32
  }
  func.func @transform_4(%arg0: i32, %arg1: i32) -> (i32, i32) {
    %c0_i32 = arith.constant 0 : i32
    %c0_i32_0 = arith.constant 0 : i32
    return %c0_i32, %arg1 : i32, i32
  }
  func.func @transform_5(%arg0: i32, %arg1: i32) -> (i32, i32) {
    %c0_i32 = arith.constant 0 : i32
    %c0_i32_0 = arith.constant 0 : i32
    return %arg1, %c0_i32 : i32, i32
  }
  func.func @transform_6(%arg0: i32, %arg1: i32) -> (i32, i32) {
    %c0_i32 = arith.constant 0 : i32
    %c0_i32_0 = arith.constant 0 : i32
    %c0_i32_1 = arith.constant 0 : i32
    return %c0_i32, %c0_i32_0 : i32, i32
  }
  func.func @transform_7(%arg0: i32, %arg1: i32) -> (i32, i32) {
    %c0_i32 = arith.constant 0 : i32
    %c0_i32_0 = arith.constant 0 : i32
    return %arg0, %c0_i32 : i32, i32
  }
}

</mosaic_0001>

<llo_original>
// kernel: tpu_custom_call.1
$region0: #{tpu_custom_call.1}
  #allocation0 [shape = 'u32[]', space=smem, size = 0x4, offset = 0x4, fixed_abs, tag = 'smem constant byte address 0x4 - core index']
  #allocation1 [shape = 'u32[144,128]{1,0:T(1,128)}', space=vmem, size = 0x12000, scoped, tag = 'internal scratch']
  #allocation2 [shape = 'f32[8,128]{1,0:T(8,128)}', space=vmem, size = 0x1000, scoped, tag = 'scratch operand']
  #allocation3 [shape = 'f32[8,128]{1,0:T(8,128)}', space=vmem, size = 0x1000, scoped, tag = 'scratch operand']
  %s0 = inlined_call_operand.hbm [shape: f32[16,128], index: 0, kind: input, shape index: {}]
  %s1 = inlined_call_operand.vmem [shape: f32[1,128], index: 1, kind: input, shape index: {}]
  %s2 = inlined_call_operand.vmem [shape: f32[1,128], index: 2, kind: input, shape index: {}]
  %s3 = inlined_call_operand.hbm [shape: f32[128,128], index: 3, kind: input, shape index: {}]
  %s4 = inlined_call_operand.vmem [shape: f32[1,128], index: 4, kind: input, shape index: {}]
  %s5 = inlined_call_operand.hbm [shape: f32[128,128], index: 5, kind: input, shape index: {}]
  %s6 = inlined_call_operand.vmem [shape: f32[1,128], index: 6, kind: input, shape index: {}]
  %s7 = inlined_call_operand.hbm [shape: f32[16,128], index: 7, kind: output, shape index: {}]
  %s8 = sld [smem:[#allocation0]]
  $region81: #{tpu_custom_call.1} parent=0
    _
  %s10 = ssub.s32 1, %s8
  %s11 = scalar_select 0, %s10, %s8
  $region1: #{tpu_custom_call.1} parent=0
    #allocation4 [shape = 'u8[8192]{0}', space=vmem, size = 0x2000, scoped, tag = 'input window, operand 0']
    #allocation5 [shape = 's32[2]{0}', space=sflag, size = 0x8, scoped, tag = 'scoped memory for tpu_custom_call.1']
    #allocation6 [shape = 's32[2]{0}', space=sflag, size = 0x8, scoped, tag = 'scoped memory for tpu_custom_call.1']
    #allocation7 [shape = 'u8[65536]{0}', space=vmem, size = 0x10000, scoped, tag = 'input window, operand 3, single buffered']
    #allocation8 [shape = 's32[1]{0}', space=sflag, size = 0x4, scoped, tag = 'scoped memory for tpu_custom_call.1']
    #allocation9 [shape = 'u8[65536]{0}', space=vmem, size = 0x10000, scoped, tag = 'input window, operand 5, single buffered']
    #allocation10 [shape = 'u8[8192]{0}', space=vmem, size = 0x2000, scoped, tag = 'output window, operand 0']
    %12 = vsyncpa [#allocation5], 0
    %s13 = scalar_lea.sflag [#allocation5], 1
    %14 = vsyncpa %s13, 0
    %15 = vsyncpa [#allocation8], 0
    %16 = vsyncpa [#allocation6], 0
    %s17 = scalar_lea.sflag [#allocation6], 1
    %18 = vsyncpa %s17, 0
    loop: start=0, step=1, limit=4
    $region2: #{tpu_custom_call.1} parent=1 // loop_pre_header
      _
    $region3: #{tpu_custom_call.1} parent=1 // loop_header
      %s20 = sphi 0, %s24
      %p21 = scmp.ge.s32.totalorder %s20, 4
      %s27 = sphi 0, %s39
      %s28 = sphi 0, %s35
      %s29 = sphi 0, %s27
      %s30 = sphi 0, %s28
      %s31 = sphi 0, %s29
      %s32 = sphi 0, %s30
      %s42 = sphi 0, %s44
      %s45 = sphi 0, %s42
      %s46 = sphi 0, %s45
      %s62 = sphi 0, %s46
      %s66 = sphi 0, %s66
      %s68 = sphi 0, %s66
      %s69 = sphi 0, %s68
      %s83 = sphi 0, %s69
      %s87 = sphi 0, %s87
      %s89 = sphi 0, %s87
      %s90 = sphi 0, %s89
      %s104 = sphi 0, %s90
      %s110 = sphi 0, %s112
      %s113 = sphi 0, %s110
      %s114 = sphi 0, %s113
      %s130 = sphi 0, %s114
      %s136 = sphi 0, %s138
      %s139 = sphi 0, %s136
      %s140 = sphi 0, %s139
      %s156 = sphi 0, %s140
      %s162 = sphi 0, %s164
      %s165 = sphi 0, %s162
      %s166 = sphi 0, %s165
      %s182 = sphi 0, %s166
      %s186 = sphi 0, %s186
      %s188 = sphi 0, %s186
      %s189 = sphi 0, %s188
      %s203 = sphi 0, %s189
      %s209 = sphi 0, %s211
      %s212 = sphi 0, %s209
      %s213 = sphi 0, %s212
      %s229 = sphi 0, %s213
    $region4: #{tpu_custom_call.1} parent=1 // loop_header_branch
      %23 = sbr.rel (%p21) target = $region8
    $region5: #{tpu_custom_call.1} parent=1 // loop_body
      %s25 = ssub.s32 %s20, 1
      %s26 = ssub.s32 %s20, 2
      %s33 = sadd.s32 1, %s28
      %p34 = scmp.ge.s32.totalorder %s33, 1
      %s35 = scalar_select %p34, 0, %s33
      %s36 = sadd.s32 1, %s27
      %s37 = scalar_select %p34, %s36, %s27
      %p38 = scmp.ge.s32.totalorder %s37, 2
      %s39 = scalar_select %p38, 0, %s37
      %s40 = ssub.s32 %s27, %s39
      %p41 = scmp.eq.s32.totalorder %s40, 0
      %s43 = sadd.s32 %s42, 1
      %s44 = scalar_select %p41, %s42, %s43
      %p47 = pneg %p41
      %p48 = scmp.eq.s32.totalorder %s20, 1
      %p49 = por %p47, %p48
      %p50 = scmp.ne.s32.totalorder %s42, %s45
      %p51 = scmp.eq.s32.totalorder %s20, 0
      %p52 = por %p50, %p51
      %p53 = scmp.ne.s32.totalorder %s42, %s45
      %p54 = scmp.eq.s32.totalorder %s25, 1
      %p55 = por %p53, %p54
      %p56 = scmp.ne.s32.totalorder %s45, %s46
      %p57 = scmp.eq.s32.totalorder %s25, 0
      %p58 = por %p56, %p57
      %p59 = scmp.ne.s32.totalorder %s45, %s46
      %p60 = scmp.eq.s32.totalorder %s26, 1
      %p61 = por %p59, %p60
      %p63 = scmp.ne.s32.totalorder %s46, %s62
      %p64 = scmp.eq.s32.totalorder %s26, 0
      %p65 = por %p63, %p64
      %s67 = sadd.s32 %s66, 1
      %p70 = scmp.eq.s32.totalorder %s20, 1
      %p71 = scmp.ne.s32.totalorder %s66, %s68
      %p72 = scmp.eq.s32.totalorder %s20, 0
      %p73 = por %p71, %p72
      %p74 = scmp.ne.s32.totalorder %s66, %s68
      %p75 = scmp.eq.s32.totalorder %s25, 1
      %p76 = por %p74, %p75
      %p77 = scmp.ne.s32.totalorder %s68, %s69
      %p78 = scmp.eq.s32.totalorder %s25, 0
      %p79 = por %p77, %p78
      %p80 = scmp.ne.s32.totalorder %s68, %s69
      %p81 = scmp.eq.s32.totalorder %s26, 1
      %p82 = por %p80, %p81
      %p84 = scmp.ne.s32.totalorder %s69, %s83
      %p85 = scmp.eq.s32.totalorder %s26, 0
      %p86 = por %p84, %p85
      %s88 = sadd.s32 %s87, 1
      %p91 = scmp.eq.s32.totalorder %s20, 1
      %p92 = scmp.ne.s32.totalorder %s87, %s89
      %p93 = scmp.eq.s32.totalorder %s20, 0
      %p94 = por %p92, %p93
      %p95 = scmp.ne.s32.totalorder %s87, %s89
      %p96 = scmp.eq.s32.totalorder %s25, 1
      %p97 = por %p95, %p96
      %p98 = scmp.ne.s32.totalorder %s89, %s90
      %p99 = scmp.eq.s32.totalorder %s25, 0
      %p100 = por %p98, %p99
      %p101 = scmp.ne.s32.totalorder %s89, %s90
      %p102 = scmp.eq.s32.totalorder %s26, 1
      %p103 = por %p101, %p102
      %p105 = scmp.ne.s32.totalorder %s90, %s104
      %p106 = scmp.eq.s32.totalorder %s26, 0
      %p107 = por %p105, %p106
      %s108 = ssub.s32 %s28, %s35
      %p109 = scmp.eq.s32.totalorder %s108, 0
      %s111 = sadd.s32 %s110, 1
      %s112 = scalar_select %p109, %s110, %s111
      %p115 = pneg %p109
      %p116 = scmp.eq.s32.totalorder %s20, 1
      %p117 = por %p115, %p116
      %p118 = scmp.ne.s32.totalorder %s110, %s113
      %p119 = scmp.eq.s32.totalorder %s20, 0
      %p120 = por %p118, %p119
      %p121 = scmp.ne.s32.totalorder %s110, %s113
      %p122 = scmp.eq.s32.totalorder %s25, 1
      %p123 = por %p121, %p122
      %p124 = scmp.ne.s32.totalorder %s113, %s114
      %p125 = scmp.eq.s32.totalorder %s25, 0
      %p126 = por %p124, %p125
      %p127 = scmp.ne.s32.totalorder %s113, %s114
      %p128 = scmp.eq.s32.totalorder %s26, 1
      %p129 = por %p127, %p128
      %p131 = scmp.ne.s32.totalorder %s114, %s130
      %p132 = scmp.eq.s32.totalorder %s26, 0
      %p133 = por %p131, %p132
      %s134 = ssub.s32 %s28, %s35
      %p135 = scmp.eq.s32.totalorder %s134, 0
      %s137 = sadd.s32 %s136, 1
      %s138 = scalar_select %p135, %s136, %s137
      %p141 = pneg %p135
      %p142 = scmp.eq.s32.totalorder %s20, 1
      %p143 = por %p141, %p142
      %p144 = scmp.ne.s32.totalorder %s136, %s139
      %p145 = scmp.eq.s32.totalorder %s20, 0
      %p146 = por %p144, %p145
      %p147 = scmp.ne.s32.totalorder %s136, %s139
      %p148 = scmp.eq.s32.totalorder %s25, 1
      %p149 = por %p147, %p148
      %p150 = scmp.ne.s32.totalorder %s139, %s140
      %p151 = scmp.eq.s32.totalorder %s25, 0
      %p152 = por %p150, %p151
      %p153 = scmp.ne.s32.totalorder %s139, %s140
      %p154 = scmp.eq.s32.totalorder %s26, 1
      %p155 = por %p153, %p154
      %p157 = scmp.ne.s32.totalorder %s140, %s156
      %p158 = scmp.eq.s32.totalorder %s26, 0
      %p159 = por %p157, %p158
      %s160 = ssub.s32 %s28, %s35
      %p161 = scmp.eq.s32.totalorder %s160, 0
      %s163 = sadd.s32 %s162, 1
      %s164 = scalar_select %p161, %s162, %s163
      %p167 = pneg %p161
      %p168 = scmp.eq.s32.totalorder %s20, 1
      %p169 = por %p167, %p168
      %p170 = scmp.ne.s32.totalorder %s162, %s165
      %p171 = scmp.eq.s32.totalorder %s20, 0
      %p172 = por %p170, %p171
      %p173 = scmp.ne.s32.totalorder %s162, %s165
      %p174 = scmp.eq.s32.totalorder %s25, 1
      %p175 = por %p173, %p174
      %p176 = scmp.ne.s32.totalorder %s165, %s166
      %p177 = scmp.eq.s32.totalorder %s25, 0
      %p178 = por %p176, %p177
      %p179 = scmp.ne.s32.totalorder %s165, %s166
      %p180 = scmp.eq.s32.totalorder %s26, 1
      %p181 = por %p179, %p180
      %p183 = scmp.ne.s32.totalorder %s166, %s182
      %p184 = scmp.eq.s32.totalorder %s26, 0
      %p185 = por %p183, %p184
      %s187 = sadd.s32 %s186, 1
      %p190 = scmp.eq.s32.totalorder %s20, 1
      %p191 = scmp.ne.s32.totalorder %s186, %s188
      %p192 = scmp.eq.s32.totalorder %s20, 0
      %p193 = por %p191, %p192
      %p194 = scmp.ne.s32.totalorder %s186, %s188
      %p195 = scmp.eq.s32.totalorder %s25, 1
      %p196 = por %p194, %p195
      %p197 = scmp.ne.s32.totalorder %s188, %s189
      %p198 = scmp.eq.s32.totalorder %s25, 0
      %p199 = por %p197, %p198
      %p200 = scmp.ne.s32.totalorder %s188, %s189
      %p201 = scmp.eq.s32.totalorder %s26, 1
      %p202 = por %p200, %p201
      %p204 = scmp.ne.s32.totalorder %s189, %s203
      %p205 = scmp.eq.s32.totalorder %s26, 0
      %p206 = por %p204, %p205
      %s207 = ssub.s32 %s27, %s39
      %p208 = scmp.eq.s32.totalorder %s207, 0
      %s210 = sadd.s32 %s209, 1
      %s211 = scalar_select %p208, %s209, %s210
      %p214 = pneg %p208
      %p215 = scmp.eq.s32.totalorder %s20, 1
      %p216 = por %p214, %p215
      %p217 = scmp.ne.s32.totalorder %s209, %s212
      %p218 = scmp.eq.s32.totalorder %s20, 0
      %p219 = por %p217, %p218
      %p220 = scmp.ne.s32.totalorder %s209, %s212
      %p221 = scmp.eq.s32.totalorder %s25, 1
      %p222 = por %p220, %p221
      %p223 = scmp.ne.s32.totalorder %s212, %s213
      %p224 = scmp.eq.s32.totalorder %s25, 0
      %p225 = por %p223, %p224
      %p226 = scmp.ne.s32.totalorder %s212, %s213
      %p227 = scmp.eq.s32.totalorder %s26, 1
      %p228 = por %p226, %p227
      %p230 = scmp.ne.s32.totalorder %s213, %s229
      %p231 = scmp.eq.s32.totalorder %s26, 0
      %p232 = por %p230, %p231
      %p233 = scmp.le.s32.totalorder 1, %s20
      %p234 = scmp.lt.s32.totalorder %s20, 3
      %p235 = pnand %p233, %p234
      %p236 = pneg %p235
      // Predicated region
      $region9: #{tpu_custom_call.1} parent=5 // pred_check
        _
      $region10: #{tpu_custom_call.1} parent=5 // pred_check_branch
        %238 = sbr.rel (%p235) target = $region12
      $region11: #{tpu_custom_call.1} parent=5 // pred_region
        %s239 = ssub.s32 %s20, 1
        // Predicated region
        $region13: #{tpu_custom_call.1} parent=11 // pred_check
          %p240 = pneg %p79
        $region14: #{tpu_custom_call.1} parent=11 // pred_check_branch
          %242 = sbr.rel (%p240) target = $region16
        $region15: #{tpu_custom_call.1} parent=11 // pred_region
          _
        $region16: #{tpu_custom_call.1} parent=11 // pred_fallthru
          _
        // Predicated region
        $region17: #{tpu_custom_call.1} parent=11 // pred_check
          %p243 = pneg %p100
        $region18: #{tpu_custom_call.1} parent=11 // pred_check_branch
          %245 = sbr.rel (%p243) target = $region20
        $region19: #{tpu_custom_call.1} parent=11 // pred_region
          _
        $region20: #{tpu_custom_call.1} parent=11 // pred_fallthru
          _
        // Predicated region
        $region21: #{tpu_custom_call.1} parent=11 // pred_check
          %p246 = pneg %p126
        $region22: #{tpu_custom_call.1} parent=11 // pred_check_branch
          %248 = sbr.rel (%p246) target = $region24
        $region23: #{tpu_custom_call.1} parent=11 // pred_region
          %s250 = ssub.s32 2048, 2048
          %251 = vsyncadd [#allocation8], %s250
          %s252 = smul.addr %s30, 128
          %s253 = scalar_lea.hbm %s3, %s252
          %s254 = sshll.u32 [#allocation7], 4
          %s255 = int_to_ptr.vmem [resolvable:$true] %s254
          %260 = dma.hbm_to_vmem [thread:$0]  %s253, 2048, %s255, [#allocation8], 128, 128, 8
        $region24: #{tpu_custom_call.1} parent=11 // pred_fallthru
          _
        // Predicated region
        $region25: #{tpu_custom_call.1} parent=11 // pred_check
          %p261 = pneg %p152
        $region26: #{tpu_custom_call.1} parent=11 // pred_check_branch
          %263 = sbr.rel (%p261) target = $region28
        $region27: #{tpu_custom_call.1} parent=11 // pred_region
          %p264 = scmp.lt.s32.totalorder %s30, 0
          %s265 = scalar_select %p264, %s30, 0
          %s266 = scalar_lea.vmem %s4, %s265
        $region28: #{tpu_custom_call.1} parent=11 // pred_fallthru
          _
        // Predicated region
        $region29: #{tpu_custom_call.1} parent=11 // pred_check
          %p267 = pneg %p178
        $region30: #{tpu_custom_call.1} parent=11 // pred_check_branch
          %269 = sbr.rel (%p267) target = $region32
        $region31: #{tpu_custom_call.1} parent=11 // pred_region
          %s270 = smul.u32 16, %s30
          %s272 = ssub.s32 2048, 2048
          %273 = vsyncadd [#allocation8], %s272
          %s274 = smul.addr %s270, 128
          %s275 = scalar_lea.hbm %s5, %s274
          %s276 = sshll.u32 [#allocation9], 4
          %s277 = int_to_ptr.vmem [resolvable:$true] %s276
          %282 = dma.hbm_to_vmem [thread:$0]  %s275, 2048, %s277, [#allocation8], 128, 128, 8
        $region32: #{tpu_custom_call.1} parent=11 // pred_fallthru
          _
        // Predicated region
        $region33: #{tpu_custom_call.1} parent=11 // pred_check
          %p283 = pneg %p199
        $region34: #{tpu_custom_call.1} parent=11 // pred_check_branch
          %285 = sbr.rel (%p283) target = $region36
        $region35: #{tpu_custom_call.1} parent=11 // pred_region
          _
        $region36: #{tpu_custom_call.1} parent=11 // pred_fallthru
          _
      $region12: #{tpu_custom_call.1} parent=5 // pred_fallthru
        _
      %p286 = scmp.lt.s32.totalorder %s20, 2
      // Predicated region
      $region37: #{tpu_custom_call.1} parent=5 // pred_check
        %p287 = pneg %p286
      $region38: #{tpu_custom_call.1} parent=5 // pred_check_branch
        %289 = sbr.rel (%p287) target = $region40
      $region39: #{tpu_custom_call.1} parent=5 // pred_region
        // Predicated region
        $region41: #{tpu_custom_call.1} parent=39 // pred_check
          %p290 = pneg %p52
        $region42: #{tpu_custom_call.1} parent=39 // pred_check_branch
          %292 = sbr.rel (%p290) target = $region44
        $region43: #{tpu_custom_call.1} parent=39 // pred_region
          %s293 = sand.u32 %s42, 1
          %s294 = scalar_lea.sflag [#allocation5], %s293
          %s295 = sand.u32 %s42, 1
          %s296 = smul.addr %s295, 8
          %s297 = scalar_lea.vmem [#allocation4], %s296
          %s299 = ssub.s32 128, 128
          %300 = vsyncadd %s294, %s299
          %s301 = smul.addr %s27, 128
          %s302 = scalar_lea.hbm %s0, %s301
          %s304 = sshll.u32 %s297, 4
          %s305 = int_to_ptr.vmem [resolvable:$true] %s304
          %307 = dma.hbm_to_vmem [thread:$0]  %s302, 128, %s305, %s294
        $region44: #{tpu_custom_call.1} parent=39 // pred_fallthru
          _
      $region40: #{tpu_custom_call.1} parent=5 // pred_fallthru
        _
      %p308 = scmp.le.s32.totalorder 1, %s20
      %p309 = scmp.lt.s32.totalorder %s20, 3
      %p310 = pnand %p308, %p309
      %p311 = pneg %p310
      // Predicated region
      $region45: #{tpu_custom_call.1} parent=5 // pred_check
        _
      $region46: #{tpu_custom_call.1} parent=5 // pred_check_branch
        %313 = sbr.rel (%p310) target = $region48
      $region47: #{tpu_custom_call.1} parent=5 // pred_region
        %s314 = ssub.s32 %s20, 1
        %s315 = sand.u32 %s45, 1
        %s316 = scalar_lea.sflag [#allocation5], %s315
        %s317 = sand.u32 %s45, 1
        %s318 = smul.addr %s317, 8
        %s319 = scalar_lea.vmem [#allocation4], %s318
        // Predicated region
        $region49: #{tpu_custom_call.1} parent=47 // pred_check
          %p320 = pneg %p58
        $region50: #{tpu_custom_call.1} parent=47 // pred_check_branch
          %322 = sbr.rel (%p320) target = $region52
        $region51: #{tpu_custom_call.1} parent=47 // pred_region
          %323 = dma.done %s316, 128
        $region52: #{tpu_custom_call.1} parent=47 // pred_fallthru
          _
        // Predicated region
        $region53: #{tpu_custom_call.1} parent=47 // pred_check
          %p324 = pneg %p126
        $region54: #{tpu_custom_call.1} parent=47 // pred_check_branch
          %326 = sbr.rel (%p324) target = $region56
        $region55: #{tpu_custom_call.1} parent=47 // pred_region
          %327 = dma.done [#allocation8], 2048
        $region56: #{tpu_custom_call.1} parent=47 // pred_fallthru
          _
        // Predicated region
        $region57: #{tpu_custom_call.1} parent=47 // pred_check
          %p328 = pneg %p178
        $region58: #{tpu_custom_call.1} parent=47 // pred_check_branch
          %330 = sbr.rel (%p328) target = $region60
        $region59: #{tpu_custom_call.1} parent=47 // pred_region
          %331 = dma.done [#allocation8], 2048
        $region60: #{tpu_custom_call.1} parent=47 // pred_fallthru
          _
        %s332 = sand.u32 %s45, 1
        %s333 = scalar_lea.sflag [#allocation5], %s332
        %s334 = sand.u32 %s45, 1
        %s335 = smul.addr %s334, 8
        %s336 = scalar_lea.vmem [#allocation4], %s335
        %p337 = pneg %p58
        %p338 = pneg %p55
        %p339 = pneg %p79
        %p340 = pneg %p76
        %p341 = pneg %p100
        %p342 = pneg %p97
        %p343 = pneg %p126
        %p344 = pneg %p123
        %p345 = scmp.lt.s32.totalorder %s30, 0
        %s346 = scalar_select %p345, %s30, 0
        %s347 = scalar_lea.vmem %s4, %s346
        %p348 = pneg %p152
        %p349 = pneg %p149
        %p350 = pneg %p178
        %p351 = pneg %p175
        %p352 = pneg %p199
        %p353 = pneg %p196
        %p354 = pneg %p225
        %p355 = pneg %p222
        %s356 = sand.u32 %s212, 1
        %s357 = scalar_lea.sflag [#allocation6], %s356
        %s358 = sand.u32 %s212, 1
        %s359 = smul.addr %s358, 8
        %s360 = scalar_lea.vmem [#allocation10], %s359
        %p361 = scmp.lt.s32.totalorder %s30, 0
        %s362 = scalar_select %p361, %s30, 0
        %s363 = scalar_lea.vmem %s4, %s362
        %s364 = smul.u32 16, %s30
        %p365 = scmp.eq.s32.totalorder %s30, 0
        // Predicated region
        $region61: #{tpu_custom_call.1} parent=47 // pred_check
          %p366 = pneg %p365
        $region62: #{tpu_custom_call.1} parent=47 // pred_check_branch
          %368 = sbr.rel (%p366) target = $region64
        $region63: #{tpu_custom_call.1} parent=47 // pred_region
          %v369 = vld [vmem:[%s319] sm:$0xff]
          %370 = vadd.xlane.f32.xlu0 %v369
          %v371 = vpop.xlane.xlu0 %370
          %v372 = vmul.f32 %v371, 0.03125
          %v373 = vsub.f32 %v369, %v372
          %v374 = vlaneseq
          %v375 = vand.u32 %v374, 127
          %vm376 = vcmp.lt.s32.totalorder %v375, 32
          %v377 = vsel %vm376, %v373, 0.0
          %v378 = vmul.f32 %v377, %v377
          %379 = vadd.xlane.f32.xlu0 %v378
          %v380 = vpop.xlane.xlu0 %379
          %v381 = vmul.f32 %v380, 0.03125
          %v382 = vadd.f32 %v381, 1e-05
          %v383 = vrsqrt.pop %v382
          %v384 = vmul.f32 %v377, %v383
          %v385 = vld [vmem:[%s1] sm:$0x1]
          %v387 = vlaneseq
          %v388 = vshrl.u32 %v387, 7
          %v389 = vsub.s32 0, %v388
          %v390 = vrot.slane %v385, %v389
          %v392 = vmul.f32 %v384, %v390
          %v393 = vld [vmem:[%s2] sm:$0x1]
          %v395 = vlaneseq
          %v396 = vshrl.u32 %v395, 7
          %v397 = vsub.s32 0, %v396
          %v398 = vrot.slane %v393, %v397
          %v400 = vadd.f32 %v392, %v398
          %401 = vst [vmem:[#allocation2] sm:$0xff] %v400
          %402 = vst [vmem:[#allocation3] sm:$0xff] 0.0
        $region64: #{tpu_custom_call.1} parent=47 // pred_fallthru
          _
        %v403 = vld [vmem:[#allocation2] sm:$0xff]
        %v404 = vld [vmem:[#allocation7] sm:$0xff]
        %v405 = vld [vmem:[#allocation7 + $0x8] sm:$0xff]
        %v406 = vld [vmem:[#allocation7 + $0x10] sm:$0xff]
        %v407 = vld [vmem:[#allocation7 + $0x18] sm:$0xff]
        %v408 = vld [vmem:[#allocation7 + $0x20] sm:$0xff]
        %v409 = vld [vmem:[#allocation7 + $0x28] sm:$0xff]
        %v410 = vld [vmem:[#allocation7 + $0x30] sm:$0xff]
        %v411 = vld [vmem:[#allocation7 + $0x38] sm:$0xff]
        %v412 = vld [vmem:[#allocation7 + $0x40] sm:$0xff]
        %v413 = vld [vmem:[#allocation7 + $0x48] sm:$0xff]
        %v414 = vld [vmem:[#allocation7 + $0x50] sm:$0xff]
        %v415 = vld [vmem:[#allocation7 + $0x58] sm:$0xff]
        %v416 = vld [vmem:[#allocation7 + $0x60] sm:$0xff]
        %v417 = vld [vmem:[#allocation7 + $0x68] sm:$0xff]
        %v418 = vld [vmem:[#allocation7 + $0x70] sm:$0xff]
        %v419 = vld [vmem:[#allocation7 + $0x78] sm:$0xff]
        %v420 = vld [vmem:[%s363] sm:$0x1]
        %v422 = vlaneseq
        %v423 = vshrl.u32 %v422, 7
        %v424 = vsub.s32 0, %v423
        %v425 = vrot.slane %v420, %v424
        %427 = vmatprep.subr.mxu0 0.0
        %428 = vmatpush1.msra.mxu0 %v419
        %429 = vmatprep.subr.mxu0 0.0
        %430 = vmatpush1.msra.mxu0 %v418
        %431 = vmatprep.subr.mxu0 0.0
        %432 = vmatpush1.msra.mxu0 %v417
        %433 = vmatprep.subr.mxu0 0.0
        %434 = vmatpush1.msra.mxu0 %v416
        %435 = vmatprep.subr.mxu0 0.0
        %436 = vmatpush1.msra.mxu0 %v415
        %437 = vmatprep.subr.mxu0 0.0
        %438 = vmatpush1.msra.mxu0 %v414
        %439 = vmatprep.subr.mxu0 0.0
        %440 = vmatpush1.msra.mxu0 %v413
        %441 = vmatprep.subr.mxu0 0.0
        %442 = vmatpush1.msra.mxu0 %v412
        %443 = vmatprep.subr.mxu0 0.0
        %444 = vmatpush1.msra.mxu0 %v411
        %445 = vmatprep.subr.mxu0 0.0
        %446 = vmatpush1.msra.mxu0 %v410
        %447 = vmatprep.subr.mxu0 0.0
        %448 = vmatpush1.msra.mxu0 %v409
        %449 = vmatprep.subr.mxu0 0.0
        %450 = vmatpush1.msra.mxu0 %v408
        %451 = vmatprep.subr.mxu0 0.0
        %452 = vmatpush1.msra.mxu0 %v407
        %453 = vmatprep.subr.mxu0 0.0
        %454 = vmatpush1.msra.mxu0 %v406
        %455 = vmatprep.subr.mxu0 0.0
        %456 = vmatpush1.msra.mxu0 %v405
        %457 = vmatprep.subr.mxu0 0.0
        %458 = vmatpush1.msra.mxu0 %v404
        %459 = vmatprep.subr.mxu0 0.0
        %460 = vmatpush2.msra.mxu0 0.0
        %461 = vmatprep.subr.mxu0 0.0
        %462 = vmatpush2.msra.mxu0 0.0
        %463 = vmatprep.subr.mxu0 0.0
        %464 = vmatpush2.msra.mxu0 0.0
        %465 = vmatprep.subr.mxu0 0.0
        %466 = vmatpush2.msra.mxu0 0.0
        %467 = vmatprep.subr.mxu0 0.0
        %468 = vmatpush2.msra.mxu0 0.0
        %469 = vmatprep.subr.mxu0 0.0
        %470 = vmatpush2.msra.mxu0 0.0
        %471 = vmatprep.subr.mxu0 0.0
        %472 = vmatpush2.msra.mxu0 0.0
        %473 = vmatprep.subr.mxu0 0.0
        %474 = vmatpush2.msra.mxu0 0.0
        %475 = vmatprep.subr.mxu0 0.0
        %476 = vmatpush2.msra.mxu0 0.0
        %477 = vmatprep.subr.mxu0 0.0
        %478 = vmatpush2.msra.mxu0 0.0
        %479 = vmatprep.subr.mxu0 0.0
        %480 = vmatpush2.msra.mxu0 0.0
        %481 = vmatprep.subr.mxu0 0.0
        %482 = vmatpush2.msra.mxu0 0.0
        %483 = vmatprep.subr.mxu0 0.0
        %484 = vmatpush2.msra.mxu0 0.0
        %485 = vmatprep.subr.mxu0 0.0
        %486 = vmatpush2.msra.mxu0 0.0
        %487 = vmatprep.subr.mxu0 0.0
        %488 = vmatpush2.msra.mxu0 0.0
        %489 = vmatprep.subr.mxu0 0.0
        %490 = vmatpush2.msra.mxu0 0.0
        %491 = vmatprep.mubr.f32.mxu0 0.0
        %492 = vmatmul.mubr.f32.gmra.mxu0 %v403
        %v493 = vpop.f32.mrf.mxu0
        %v494 = vadd.f32 %v425, %v493
        %v495 = vpop.f32.mrf.mxu0
        %496 = vdwg.mxu0
        %v497 = vmul.f32 %v494, 0.5
        %v498 = vmul.f32 %v494, 0.70710677
        %v499 = verf.f32.pop %v498
        %v500 = vadd.f32 %v499, 1.0
        %v501 = vmul.f32 %v497, %v500
        %v502 = vld [vmem:[#allocation3] sm:$0xff]
        %v503 = vld [vmem:[#allocation9] sm:$0xff]
        %v504 = vld [vmem:[#allocation9 + $0x8] sm:$0xff]
        %v505 = vld [vmem:[#allocation9 + $0x10] sm:$0xff]
        %v506 = vld [vmem:[#allocation9 + $0x18] sm:$0xff]
        %v507 = vld [vmem:[#allocation9 + $0x20] sm:$0xff]
        %v508 = vld [vmem:[#allocation9 + $0x28] sm:$0xff]
        %v509 = vld [vmem:[#allocation9 + $0x30] sm:$0xff]
        %v510 = vld [vmem:[#allocation9 + $0x38] sm:$0xff]
        %v511 = vld [vmem:[#allocation9 + $0x40] sm:$0xff]
        %v512 = vld [vmem:[#allocation9 + $0x48] sm:$0xff]
        %v513 = vld [vmem:[#allocation9 + $0x50] sm:$0xff]
        %v514 = vld [vmem:[#allocation9 + $0x58] sm:$0xff]
        %v515 = vld [vmem:[#allocation9 + $0x60] sm:$0xff]
        %v516 = vld [vmem:[#allocation9 + $0x68] sm:$0xff]
        %v517 = vld [vmem:[#allocation9 + $0x70] sm:$0xff]
        %v518 = vld [vmem:[#allocation9 + $0x78] sm:$0xff]
        %519 = vmatprep.subr.mxu0 0.0
        %520 = vmatpush1.msra.mxu0 %v518
        %521 = vmatprep.subr.mxu0 0.0
        %522 = vmatpush1.msra.mxu0 %v517
        %523 = vmatprep.subr.mxu0 0.0
        %524 = vmatpush1.msra.mxu0 %v516
        %525 = vmatprep.subr.mxu0 0.0
        %526 = vmatpush1.msra.mxu0 %v515
        %527 = vmatprep.subr.mxu0 0.0
        %528 = vmatpush1.msra.mxu0 %v514
        %529 = vmatprep.subr.mxu0 0.0
        %530 = vmatpush1.msra.mxu0 %v513
        %531 = vmatprep.subr.mxu0 0.0
        %532 = vmatpush1.msra.mxu0 %v512
        %533 = vmatprep.subr.mxu0 0.0
        %534 = vmatpush1.msra.mxu0 %v511
        %535 = vmatprep.subr.mxu0 0.0
        %536 = vmatpush1.msra.mxu0 %v510
        %537 = vmatprep.subr.mxu0 0.0
        %538 = vmatpush1.msra.mxu0 %v509
        %539 = vmatprep.subr.mxu0 0.0
        %540 = vmatpush1.msra.mxu0 %v508
        %541 = vmatprep.subr.mxu0 0.0
        %542 = vmatpush1.msra.mxu0 %v507
        %543 = vmatprep.subr.mxu0 0.0
        %544 = vmatpush1.msra.mxu0 %v506
        %545 = vmatprep.subr.mxu0 0.0
        %546 = vmatpush1.msra.mxu0 %v505
        %547 = vmatprep.subr.mxu0 0.0
        %548 = vmatpush1.msra.mxu0 %v504
        %549 = vmatprep.subr.mxu0 0.0
        %550 = vmatpush1.msra.mxu0 %v503
        %551 = vmatprep.subr.mxu0 0.0
        %552 = vmatpush2.msra.mxu0 0.0
        %553 = vmatprep.subr.mxu0 0.0
        %554 = vmatpush2.msra.mxu0 0.0
        %555 = vmatprep.subr.mxu0 0.0
        %556 = vmatpush2.msra.mxu0 0.0
        %557 = vmatprep.subr.mxu0 0.0
        %558 = vmatpush2.msra.mxu0 0.0
        %559 = vmatprep.subr.mxu0 0.0
        %560 = vmatpush2.msra.mxu0 0.0
        %561 = vmatprep.subr.mxu0 0.0
        %562 = vmatpush2.msra.mxu0 0.0
        %563 = vmatprep.subr.mxu0 0.0
        %564 = vmatpush2.msra.mxu0 0.0
        %565 = vmatprep.subr.mxu0 0.0
        %566 = vmatpush2.msra.mxu0 0.0
        %567 = vmatprep.subr.mxu0 0.0
        %568 = vmatpush2.msra.mxu0 0.0
        %569 = vmatprep.subr.mxu0 0.0
        %570 = vmatpush2.msra.mxu0 0.0
        %571 = vmatprep.subr.mxu0 0.0
        %572 = vmatpush2.msra.mxu0 0.0
        %573 = vmatprep.subr.mxu0 0.0
        %574 = vmatpush2.msra.mxu0 0.0
        %575 = vmatprep.subr.mxu0 0.0
        %576 = vmatpush2.msra.mxu0 0.0
        %577 = vmatprep.subr.mxu0 0.0
        %578 = vmatpush2.msra.mxu0 0.0
        %579 = vmatprep.subr.mxu0 0.0
        %580 = vmatpush2.msra.mxu0 0.0
        %581 = vmatprep.subr.mxu0 0.0
        %582 = vmatpush2.msra.mxu0 0.0
        %583 = vmatprep.mubr.f32.mxu0 0.0
        %584 = vmatmul.mubr.f32.gmra.mxu0 %v501
        %v585 = vpop.f32.mrf.mxu0
        %v586 = vadd.f32 0.0, %v585
        %v587 = vpop.f32.mrf.mxu0
        %588 = vdwg.mxu0
        %v589 = vadd.f32 %v502, %v586
        %590 = vst [vmem:[#allocation3] sm:$0xff] %v589
        // Predicated region
        $region65: #{tpu_custom_call.1} parent=47 // pred_check
          %p591 = pneg %p365
        $region66: #{tpu_custom_call.1} parent=47 // pred_check_branch
          %593 = sbr.rel (%p591) target = $region68
        $region67: #{tpu_custom_call.1} parent=47 // pred_region
          %v594 = vld [vmem:[#allocation3] sm:$0xff]
          %v595 = vld [vmem:[%s6] sm:$0x1]
          %v597 = vlaneseq
          %v598 = vshrl.u32 %v597, 7
          %v599 = vsub.s32 0, %v598
          %v600 = vrot.slane %v595, %v599
          %v602 = vadd.f32 %v594, %v600
          %v603 = vld [vmem:[%s319] sm:$0xff]
          %v604 = vadd.f32 %v602, %v603
          %605 = vst [vmem:[%s360] sm:$0xff] %v604
        $region68: #{tpu_custom_call.1} parent=47 // pred_fallthru
          _
        %s606 = sand.u32 %s212, 1
        %s607 = scalar_lea.sflag [#allocation6], %s606
        %s608 = sand.u32 %s212, 1
        %s609 = smul.addr %s608, 8
        %s610 = scalar_lea.vmem [#allocation10], %s609
        // Predicated region
        $region69: #{tpu_custom_call.1} parent=47 // pred_check
          %p611 = pneg %p222
        $region70: #{tpu_custom_call.1} parent=47 // pred_check_branch
          %613 = sbr.rel (%p611) target = $region72
        $region71: #{tpu_custom_call.1} parent=47 // pred_region
          %s615 = ssub.s32 128, 128
          %616 = vsyncadd %s607, %s615
          %s617 = smul.addr %s29, 128
          %s618 = scalar_lea.hbm %s7, %s617
          %s620 = sshll.u32 %s610, 4
          %s621 = int_to_ptr.vmem [resolvable:$true] %s620
          %623 = dma.vmem_to_hbm [thread:$0]  %s621, 128, %s618, %s607
        $region72: #{tpu_custom_call.1} parent=47 // pred_fallthru
          _
      $region48: #{tpu_custom_call.1} parent=5 // pred_fallthru
        _
      %p624 = scmp.le.s32.totalorder 2, %s20
      // Predicated region
      $region73: #{tpu_custom_call.1} parent=5 // pred_check
        %p625 = pneg %p624
      $region74: #{tpu_custom_call.1} parent=5 // pred_check_branch
        %627 = sbr.rel (%p625) target = $region76
      $region75: #{tpu_custom_call.1} parent=5 // pred_region
        %s628 = ssub.s32 %s20, 2
        // Predicated region
        $region77: #{tpu_custom_call.1} parent=75 // pred_check
          %p629 = pneg %p228
        $region78: #{tpu_custom_call.1} parent=75 // pred_check_branch
          %631 = sbr.rel (%p629) target = $region80
        $region79: #{tpu_custom_call.1} parent=75 // pred_region
          %s632 = sand.u32 %s213, 1
          %s633 = scalar_lea.sflag [#allocation6], %s632
          %s634 = sand.u32 %s213, 1
          %s635 = smul.addr %s634, 8
          %s636 = scalar_lea.vmem [#allocation10], %s635
          %637 = dma.done %s633, 128
        $region80: #{tpu_custom_call.1} parent=75 // pred_fallthru
          _
      $region76: #{tpu_custom_call.1} parent=5 // pred_fallthru
        _
    $region6: #{tpu_custom_call.1} parent=1 // loop_footer
      %s24 = sadd.s32 1, %s20
    $region7: #{tpu_custom_call.1} parent=1 // loop_footer_branch
      %19 = sbr.rel target = $region3
    $region8: #{tpu_custom_call.1} parent=1 // loop_exit
      _
    %638 = vsyncpa [#allocation5], 1
    %s639 = scalar_lea.sflag [#allocation5], 1
    %640 = vsyncpa %s639, 1
    %641 = vsyncpa [#allocation8], 1
    %642 = vsyncpa [#allocation6], 1
    %s643 = scalar_lea.sflag [#allocation6], 1
    %644 = vsyncpa %s643, 1

</llo_original>
